<compile_context>
chip_gen: v7x
topology: tpu7x:2x2x1
jax: 0.10.0
libtpu: 0.0.40
codegen_flags: <defaults>
</compile_context>

<pallas_src>
import functools

import jax
import jax.numpy as jnp
from jax.experimental import pallas as pl
from jax.experimental.pallas import tpu as pltpu


def _round_up(x, m):
    return ((x + m - 1) // m) * m


# ---------------------------------------------------------------------------
# Fused Pallas kernel: whole layer chain, all heads of a group, one batch elem.
# ---------------------------------------------------------------------------
def _fused_group_kernel(*refs, num_layers, K, L, pad):
    """refs layout:
      refs[0]                       x_col  (1, L, K*Cin)   im2col'd padded input
      refs[1+2*j], refs[2+2*j]      (W_j, b_j) for layer j, j = 0..num_layers-1
          j == 0 : W0 (K*Cin, C0), b0 (1, C0)        heads stacked on output axis
          j >= 1 : Wj (K, C_hid, C_out_j), bj (1, C_out_j)  block-diag across heads
      refs[1+2*num_layers]          out    (1, L, C_last)  (C_last padded to 128k)
      refs[2+2*num_layers]          hid    (L + 2*pad, C_hid) VMEM scratch
                                           (only present if num_layers > 1)
    """
    x_col_ref = refs[0]
    wb = refs[1:1 + 2 * num_layers]
    out_ref = refs[1 + 2 * num_layers]

    # ---- layer 0: one MXU matmul over the im2col'd input, all heads at once ----
    h = jnp.dot(x_col_ref[0], wb[0][...], preferred_element_type=jnp.float32)
    h = h + wb[1][...]

    if num_layers > 1:
        h = jnp.maximum(h, 0.0)                 # hidden layer: folded BN + ReLU
        hid_ref = refs[2 + 2 * num_layers]
        # zero once so the pad rows stay zero for every subsequent layer
        hid_ref[...] = jnp.zeros(hid_ref.shape, jnp.float32)

        # ---- layers 1..num_layers-1: conv taps over the VMEM-resident hidden ----
        for j in range(1, num_layers):          # static unroll (num_layers small)
            hid_ref[pad:pad + L, :] = h
            wj_ref = wb[2 * j]
            bj_ref = wb[2 * j + 1]
            cout_j = wj_ref.shape[2]
            acc = jnp.zeros((L, cout_j), jnp.float32)
            for t in range(K):                  # static unroll over taps
                acc += jnp.dot(hid_ref[t:t + L, :], wj_ref[t],
                               preferred_element_type=jnp.float32)
            h = acc + bj_ref[...]
            if j < num_layers - 1:
                h = jnp.maximum(h, 0.0)         # ReLU on all but the final conv

    out_ref[0] = h.astype(out_ref.dtype)


def _run_group(x_col, w_list, b_list, *, L, Lp, c_hid, cout_pad, num_layers, K, pad):
    """One pallas_call for a whole group of heads (same num_conv)."""
    B, _, kcin = x_col.shape
    kernel = functools.partial(_fused_group_kernel,
                               num_layers=num_layers, K=K, L=L, pad=pad)

    in_specs = [pl.BlockSpec((1, L, kcin), lambda b: (b, 0, 0))]
    operands = [x_col]
    for wj, bj in zip(w_list, b_list):
        in_specs.append(pl.BlockSpec(wj.shape, lambda b, n=wj.ndim: (0,) * n))
        in_specs.append(pl.BlockSpec(bj.shape, lambda b: (0, 0)))
        operands.extend([wj, bj])

    scratch_shapes = []
    if num_layers > 1:
        scratch_shapes = [pltpu.VMEM((Lp, c_hid), jnp.float32)]

    return pl.pallas_call(
        kernel,
        out_shape=jax.ShapeDtypeStruct((B, L, cout_pad), jnp.float32),
        grid=(B,),
        in_specs=in_specs,
        out_specs=pl.BlockSpec((1, L, cout_pad), lambda b: (b, 0, 0)),
        scratch_shapes=scratch_shapes,
        compiler_params=pltpu.CompilerParams(
            dimension_semantics=("parallel",)),
    )(*operands)


# ---------------------------------------------------------------------------
# Parameter construction (deterministic, mirrors module __init__ shapes).
# Arrays only — no Python flags inside the traced pytree.
# ---------------------------------------------------------------------------
def build_params(key, input_channels, head_channels, kernel_size,
                 sep_head_dict, init_bias=-2.19):
    params = {}
    for cur_name in sep_head_dict:
        out_channels = sep_head_dict[cur_name]['out_channels']
        num_conv = sep_head_dict[cur_name]['num_conv']
        layers = []
        cin = input_channels
        for _ in range(num_conv - 1):
            key, k_w, k_g, k_b, k_m, k_v = jax.random.split(key, 6)
            w = 0.1 * jax.random.normal(
                k_w, (head_channels, cin, kernel_size), jnp.float32)
            # BatchNorm1d params + running stats (eval mode), folded into the conv
            gamma = 1.0 + 0.1 * jax.random.normal(k_g, (head_channels,), jnp.float32)
            beta = 0.1 * jax.random.normal(k_b, (head_channels,), jnp.float32)
            r_mean = 0.01 * jax.random.normal(k_m, (head_channels,), jnp.float32)
            r_var = 1.0 + 0.1 * jnp.abs(
                jax.random.normal(k_v, (head_channels,), jnp.float32))
            eps = 1e-5
            scale = gamma / jnp.sqrt(r_var + eps)          # (H,)
            layers.append({'w': w * scale[:, None, None],
                           'b': beta - r_mean * scale})
            cin = head_channels
        # final conv (has bias)
        key, k_w = jax.random.split(key)
        w_last = 0.1 * jax.random.normal(
            k_w, (out_channels, cin, kernel_size), jnp.float32)
        if 'hm' in cur_name:
            b_last = jnp.full((out_channels,), init_bias, jnp.float32)
        else:
            b_last = jnp.zeros((out_channels,), jnp.float32)
        layers.append({'w': w_last, 'b': b_last})
        params[cur_name] = layers
    return params


# ---------------------------------------------------------------------------
# Forward (static head structure is closed over; params are arrays only).
# ---------------------------------------------------------------------------
def _group_heads(sep_head_dict):
    groups = {}
    for name, cfg in sep_head_dict.items():
        groups.setdefault(cfg['num_conv'], []).append(name)
    return groups


def separate_head_forward(params, x_ncl, *, sep_head_dict, head_channels,
                          kernel_size):
    """x_ncl: (B, Cin, L) float32, PyTorch NCL layout.  Returns dict of NCL outputs."""
    K = kernel_size
    assert K % 2 == 1, "even kernel_size changes PyTorch output length; unsupported"
    pad = K // 2
    B, Cin, L = x_ncl.shape
    H = head_channels

    # channel-last + zero-pad + im2col, built ONCE and shared by every head
    x_blc = jnp.transpose(x_ncl, (0, 2, 1)).astype(jnp.float32)      # (B, L, Cin)
    x_pad = jnp.pad(x_blc, ((0, 0), (pad, pad), (0, 0)))             # (B, Lp, Cin)
    x_col = jnp.concatenate([x_pad[:, t:t + L, :] for t in range(K)],
                            axis=-1)                                 # (B, L, K*Cin)

    ret = {}
    for num_conv, names in _group_heads(sep_head_dict).items():
        num_layers = num_conv
        nh = len(names)
        couts = [sep_head_dict[n]['out_channels'] for n in names]
        sum_cout = sum(couts)
        cout_pad = _round_up(sum_cout, 128)        # lane-dense output store
        c_hid = nh * H if num_layers > 1 else 0

        # ---- pack weights: layer 0 dense-stacked, deeper layers block-diagonal
        w_list, b_list = [], []
        w0 = jnp.concatenate([params[n][0]['w'] for n in names], axis=0)  # (C0,Cin,K)
        b0 = jnp.concatenate([params[n][0]['b'] for n in names], axis=0)  # (C0,)
        # (C0, Cin, K) -> (K*Cin, C0); row index = t*Cin + c matches x_col layout
        w0 = jnp.transpose(w0, (2, 1, 0)).reshape(K * Cin, -1)
        if num_layers == 1:                       # layer 0 is also the final layer
            w0 = jnp.pad(w0, ((0, 0), (0, cout_pad - sum_cout)))
            b0 = jnp.pad(b0, (0, cout_pad - sum_cout))
        w_list.append(w0)
        b_list.append(b0.reshape(1, -1))

        for j in range(1, num_layers):
            last = (j == num_layers - 1)
            cout_j = cout_pad if last else nh * H
            wj = jnp.zeros((K, c_hid, cout_j), jnp.float32)
            bj = jnp.zeros((cout_j,), jnp.float32)
            col = 0
            for i, n in enumerate(names):
                w_i = params[n][j]['w']                   # (ci, H, K)
                ci = w_i.shape[0]
                wj = wj.at[:, i * H:(i + 1) * H, col:col + ci].set(
                    jnp.transpose(w_i, (2, 1, 0)))        # (K, H, ci)
                bj = bj.at[col:col + ci].set(params[n][j]['b'])
                col += ci
            w_list.append(wj)
            b_list.append(bj.reshape(1, -1))

        out_cat = _run_group(x_col, w_list, b_list, L=L, Lp=L + 2 * pad,
                             c_hid=c_hid, cout_pad=cout_pad,
                             num_layers=num_layers, K=K, pad=pad)

        # split the concatenated output back into per-head NCL tensors
        col = 0
        for n, c in zip(names, couts):
            ret[n] = jnp.transpose(out_cat[:, :, col:col + c], (0, 2, 1))
            col += c
    return ret


# ---------------------------------------------------------------------------
# Pure-JAX reference (lax conv) for correctness checking.
# ---------------------------------------------------------------------------
def reference_forward(params, x_ncl, *, sep_head_dict, kernel_size):
    pad = kernel_size // 2
    ret = {}
    for name in sep_head_dict:
        h = x_ncl.astype(jnp.float32)
        layers = params[name]
        for j, layer in enumerate(layers):
            h = jax.lax.conv_general_dilated(
                h, layer['w'], window_strides=(1,), padding=[(pad, pad)],
                dimension_numbers=('NCH', 'OIH', 'NCH'))
            h = h + layer['b'][None, :, None]
            if j < len(layers) - 1:
                h = jnp.maximum(h, 0.0)
        ret[name] = h
    return ret


if __name__ == "__main__":
    # small shapes consistent with the module's forward
    B, Cin, L = 2, 8, 16
    head_channels = 32
    kernel_size = 3
    sep_head_dict = {
        'center': {'out_channels': 2, 'num_conv': 2},
        'height': {'out_channels': 1, 'num_conv': 2},
        'hm':     {'out_channels': 3, 'num_conv': 2},
    }

    key = jax.random.PRNGKey(0)
    key, k_x = jax.random.split(key)
    x = jax.random.normal(k_x, (B, Cin, L), jnp.float32)

    params = build_params(key, Cin, head_channels, kernel_size, sep_head_dict)

    fwd = jax.jit(functools.partial(
        separate_head_forward,
        sep_head_dict=sep_head_dict,
        head_channels=head_channels,
        kernel_size=kernel_size))

    out = fwd(params, x)
    out = jax.block_until_ready(out)

    ref = reference_forward(params, x, sep_head_dict=sep_head_dict,
                            kernel_size=kernel_size)

    for name, cfg in sep_head_dict.items():
        assert out[name].shape == (B, cfg['out_channels'], L), (name, out[name].shape)
        err = float(jnp.max(jnp.abs(out[name] - ref[name])))
        assert err < 1e-2, (name, err)

    print("KERNEL_OK")
</pallas_src>

<mosaic_0001>
module attributes {stable_mosaic.version = 11 : i64} {
  func.func @_fused_group_kernel(%arg0: i32, %arg1: memref<1x16x24xf32, #tpu.memory_space<vmem>>, %arg2: memref<24x96xf32, #tpu.memory_space<vmem>>, %arg3: memref<1x96xf32, #tpu.memory_space<vmem>>, %arg4: memref<3x96x128xf32, #tpu.memory_space<vmem>>, %arg5: memref<1x128xf32, #tpu.memory_space<vmem>>, %arg6: memref<1x16x128xf32, #tpu.memory_space<vmem>>, %arg7: memref<18x96xf32, #tpu.memory_space<vmem>>) attributes {dimension_semantics = [#tpu.dimension_semantics<parallel>], iteration_bounds = array<i64: 2>, scalar_prefetch = 0 : i64, scratch_operands = 1 : i64, tpu.core_type = #tpu.core_type<tc>, window_params = [{transform_indices = @transform_0, window_bounds = array<i64: 1, 16, 24>}, {pipeline_mode = #tpu.pipeline_mode<synchronous>, transform_indices = @transform_1, window_bounds = array<i64: 24, 96>}, {pipeline_mode = #tpu.pipeline_mode<synchronous>, transform_indices = @transform_2, window_bounds = array<i64: 1, 96>}, {pipeline_mode = #tpu.pipeline_mode<synchronous>, transform_indices = @transform_3, window_bounds = array<i64: 3, 96, 128>}, {pipeline_mode = #tpu.pipeline_mode<synchronous>, transform_indices = @transform_4, window_bounds = array<i64: 1, 128>}, {transform_indices = @transform_5, window_bounds = array<i64: 1, 16, 128>}]} {
    %c0 = arith.constant 0 : index
    %c0_0 = arith.constant 0 : index
    %c0_1 = arith.constant 0 : index
    %0 = vector.load %arg1[%c0, %c0_0, %c0_1] : memref<1x16x24xf32, #tpu.memory_space<vmem>>, vector<1x16x24xf32>
    %1 = vector.shape_cast %0 : vector<1x16x24xf32> to vector<16x24xf32>
    %c0_2 = arith.constant 0 : index
    %c0_3 = arith.constant 0 : index
    %2 = vector.load %arg2[%c0_2, %c0_3] : memref<24x96xf32, #tpu.memory_space<vmem>>, vector<24x96xf32>
    %cst = arith.constant dense<0.000000e+00> : vector<16x96xf32>
    %3 = tpu.matmul %1, %2, %cst {dimension_numbers = #tpu.dot_dimension_numbers<[1], [0], [0], [1], [0, 0, 1, 1], [], []>} : vector<16x24xf32>, vector<24x96xf32>, vector<16x96xf32> -> vector<16x96xf32>
    %c0_4 = arith.constant 0 : index
    %c0_5 = arith.constant 0 : index
    %4 = vector.load %arg3[%c0_4, %c0_5] : memref<1x96xf32, #tpu.memory_space<vmem>>, vector<1x96xf32>
    %5 = vector.broadcast %4 : vector<1x96xf32> to vector<16x96xf32>
    %6 = arith.addf %3, %5 : vector<16x96xf32>
    %cst_6 = arith.constant 0.000000e+00 : f32
    %7 = vector.broadcast %cst_6 : f32 to vector<16x96xf32>
    %8 = arith.maximumf %6, %7 : vector<16x96xf32>
    %cst_7 = arith.constant 0.000000e+00 : f32
    %9 = vector.broadcast %cst_7 : f32 to vector<18x96xf32>
    %c0_8 = arith.constant 0 : index
    %c0_9 = arith.constant 0 : index
    %10 = vector.load %arg7[%c0_8, %c0_9] : memref<18x96xf32, #tpu.memory_space<vmem>>, vector<18x96xf32>
    tpu.vector_store %arg7[%c0_8, %c0_9], %9 {strides = array<i32>} : memref<18x96xf32, #tpu.memory_space<vmem>>, vector<18x96xf32>,
    %c1 = arith.constant 1 : index
    %c0_10 = arith.constant 0 : index
    %11 = vector.load %arg7[%c1, %c0_10] : memref<18x96xf32, #tpu.memory_space<vmem>>, vector<16x96xf32>
    tpu.vector_store %arg7[%c1, %c0_10], %8 {strides = array<i32>} : memref<18x96xf32, #tpu.memory_space<vmem>>, vector<16x96xf32>,
    %cst_11 = arith.constant 0.000000e+00 : f32
    %12 = vector.broadcast %cst_11 : f32 to vector<16x128xf32>
    %c0_12 = arith.constant 0 : index
    %c0_13 = arith.constant 0 : index
    %13 = vector.load %arg7[%c0_12, %c0_13] : memref<18x96xf32, #tpu.memory_space<vmem>>, vector<16x96xf32>
    %c0_14 = arith.constant 0 : index
    %c0_15 = arith.constant 0 : index
    %c0_16 = arith.constant 0 : index
    %14 = vector.load %arg4[%c0_14, %c0_15, %c0_16] : memref<3x96x128xf32, #tpu.memory_space<vmem>>, vector<1x96x128xf32>
    %15 = vector.shape_cast %14 : vector<1x96x128xf32> to vector<96x128xf32>
    %cst_17 = arith.constant dense<0.000000e+00> : vector<16x128xf32>
    %16 = tpu.matmul %13, %15, %cst_17 {dimension_numbers = #tpu.dot_dimension_numbers<[1], [0], [0], [1], [0, 0, 1, 1], [], []>} : vector<16x96xf32>, vector<96x128xf32>, vector<16x128xf32> -> vector<16x128xf32>
    %17 = arith.addf %12, %16 : vector<16x128xf32>
    %c1_18 = arith.constant 1 : index
    %c0_19 = arith.constant 0 : index
    %18 = vector.load %arg7[%c1_18, %c0_19] : memref<18x96xf32, #tpu.memory_space<vmem>>, vector<16x96xf32>
    %c1_20 = arith.constant 1 : index
    %c0_21 = arith.constant 0 : index
    %c0_22 = arith.constant 0 : index
    %19 = vector.load %arg4[%c1_20, %c0_21, %c0_22] : memref<3x96x128xf32, #tpu.memory_space<vmem>>, vector<1x96x128xf32>
    %20 = vector.shape_cast %19 : vector<1x96x128xf32> to vector<96x128xf32>
    %cst_23 = arith.constant dense<0.000000e+00> : vector<16x128xf32>
    %21 = tpu.matmul %18, %20, %cst_23 {dimension_numbers = #tpu.dot_dimension_numbers<[1], [0], [0], [1], [0, 0, 1, 1], [], []>} : vector<16x96xf32>, vector<96x128xf32>, vector<16x128xf32> -> vector<16x128xf32>
    %22 = arith.addf %17, %21 : vector<16x128xf32>
    %c2 = arith.constant 2 : index
    %c0_24 = arith.constant 0 : index
    %23 = vector.load %arg7[%c2, %c0_24] : memref<18x96xf32, #tpu.memory_space<vmem>>, vector<16x96xf32>
    %c2_25 = arith.constant 2 : index
    %c0_26 = arith.constant 0 : index
    %c0_27 = arith.constant 0 : index
    %24 = vector.load %arg4[%c2_25, %c0_26, %c0_27] : memref<3x96x128xf32, #tpu.memory_space<vmem>>, vector<1x96x128xf32>
    %25 = vector.shape_cast %24 : vector<1x96x128xf32> to vector<96x128xf32>
    %cst_28 = arith.constant dense<0.000000e+00> : vector<16x128xf32>
    %26 = tpu.matmul %23, %25, %cst_28 {dimension_numbers = #tpu.dot_dimension_numbers<[1], [0], [0], [1], [0, 0, 1, 1], [], []>} : vector<16x96xf32>, vector<96x128xf32>, vector<16x128xf32> -> vector<16x128xf32>
    %27 = arith.addf %22, %26 : vector<16x128xf32>
    %c0_29 = arith.constant 0 : index
    %c0_30 = arith.constant 0 : index
    %28 = vector.load %arg5[%c0_29, %c0_30] : memref<1x128xf32, #tpu.memory_space<vmem>>, vector<1x128xf32>
    %29 = vector.broadcast %28 : vector<1x128xf32> to vector<16x128xf32>
    %30 = arith.addf %27, %29 : vector<16x128xf32>
    %c0_31 = arith.constant 0 : index
    %c0_32 = arith.constant 0 : index
    %c0_33 = arith.constant 0 : index
    %31 = vector.load %arg6[%c0_31, %c0_32, %c0_33] : memref<1x16x128xf32, #tpu.memory_space<vmem>>, vector<1x16x128xf32>
    %32 = vector.shape_cast %31 : vector<1x16x128xf32> to vector<16x128xf32>
    %33 = vector.shape_cast %30 : vector<16x128xf32> to vector<1x16x128xf32>
    tpu.vector_store %arg6[%c0_31, %c0_32, %c0_33], %33 {strides = array<i32>} : memref<1x16x128xf32, #tpu.memory_space<vmem>>, vector<1x16x128xf32>,
    return
  }
  func.func @transform_0(%arg0: i32) -> (i32, i32, i32) {
    %c0_i32 = arith.constant 0 : i32
    %c0_i32_0 = arith.constant 0 : i32
    %c0_i32_1 = arith.constant 0 : i32
    return %arg0, %c0_i32, %c0_i32_0 : i32, i32, i32
  }
  func.func @transform_1(%arg0: i32) -> (i32, i32) {
    %c0_i32 = arith.constant 0 : i32
    %c0_i32_0 = arith.constant 0 : i32
    %c0_i32_1 = arith.constant 0 : i32
    return %c0_i32, %c0_i32_0 : i32, i32
  }
  func.func @transform_2(%arg0: i32) -> (i32, i32) {
    %c0_i32 = arith.constant 0 : i32
    %c0_i32_0 = arith.constant 0 : i32
    %c0_i32_1 = arith.constant 0 : i32
    return %c0_i32, %c0_i32_0 : i32, i32
  }
  func.func @transform_3(%arg0: i32) -> (i32, i32, i32) {
    %c0_i32 = arith.constant 0 : i32
    %c0_i32_0 = arith.constant 0 : i32
    %c0_i32_1 = arith.constant 0 : i32
    %c0_i32_2 = arith.constant 0 : i32
    return %c0_i32, %c0_i32_0, %c0_i32_1 : i32, i32, i32
  }
  func.func @transform_4(%arg0: i32) -> (i32, i32) {
    %c0_i32 = arith.constant 0 : i32
    %c0_i32_0 = arith.constant 0 : i32
    %c0_i32_1 = arith.constant 0 : i32
    return %c0_i32, %c0_i32_0 : i32, i32
  }
  func.func @transform_5(%arg0: i32) -> (i32, i32, i32) {
    %c0_i32 = arith.constant 0 : i32
    %c0_i32_0 = arith.constant 0 : i32
    %c0_i32_1 = arith.constant 0 : i32
    return %arg0, %c0_i32, %c0_i32_0 : i32, i32, i32
  }
}

</mosaic_0001>

<llo_original>
// kernel: separate_head_forward.1
$region0: #{separate_head_forward.1}
  #allocation0 [shape = 'u32[]', space=smem, size = 0x4, offset = 0x4, fixed_abs, tag = 'smem constant byte address 0x4 - core index']
  #allocation1 [shape = 'u32[144,128]{1,0:T(1,128)}', space=vmem, size = 0x12000, scoped, tag = 'internal scratch']
  #allocation2 [shape = 'f32[18,96]{1,0:T(8,128)}', space=vmem, size = 0x3000, scoped, tag = 'scratch operand']
  %s0 = inlined_call_operand.vmem [shape: f32[2,16,24], index: 0, kind: input, shape index: {}]
  %s1 = inlined_call_operand.vmem [shape: f32[24,96], index: 1, kind: input, shape index: {}]
  %s2 = inlined_call_operand.vmem [shape: f32[1,96], index: 2, kind: input, shape index: {}]
  %s3 = inlined_call_operand.vmem [shape: f32[3,96,128], index: 3, kind: input, shape index: {}]
  %s4 = inlined_call_operand.vmem [shape: f32[1,128], index: 4, kind: input, shape index: {}]
  %s5 = inlined_call_operand.vmem [shape: f32[2,16,128], index: 5, kind: output, shape index: {}]
  %s6 = sld [smem:[#allocation0]]
  $region53: #{separate_head_forward.1} parent=0
    _
  %s8 = ssub.s32 1, %s6
  %s9 = scalar_select 0, %s8, %s6
  loop: start=0, step=1, limit=4
  $region2: #{separate_head_forward.1} parent=0 // loop_pre_header
    _
  $region3: #{separate_head_forward.1} parent=0 // loop_header
    %s11 = sphi 0, %s15
    %p12 = scmp.ge.s32.totalorder %s11, 4
    %s21 = sphi 0, %s23
    %s24 = sphi 0, %s21
    %s25 = sphi 0, %s24
    %s41 = sphi 0, %s25
    %s45 = sphi 0, %s45
    %s47 = sphi 0, %s45
    %s48 = sphi 0, %s47
    %s62 = sphi 0, %s48
    %s66 = sphi 0, %s66
    %s68 = sphi 0, %s66
    %s69 = sphi 0, %s68
    %s83 = sphi 0, %s69
    %s87 = sphi 0, %s87
    %s89 = sphi 0, %s87
    %s90 = sphi 0, %s89
    %s104 = sphi 0, %s90
    %s108 = sphi 0, %s108
    %s110 = sphi 0, %s108
    %s111 = sphi 0, %s110
    %s125 = sphi 0, %s111
    %s131 = sphi 0, %s133
    %s134 = sphi 0, %s131
    %s135 = sphi 0, %s134
    %s151 = sphi 0, %s135
  $region4: #{separate_head_forward.1} parent=0 // loop_header_branch
    %14 = sbr.rel (%p12) target = $region8
  $region5: #{separate_head_forward.1} parent=0 // loop_body
    %s16 = ssub.s32 %s11, 1
    %s17 = ssub.s32 %s11, 2
    %s18 = sadd.s32 %s11, 1
    %s19 = ssub.s32 %s11, %s18
    %p20 = scmp.eq.s32.totalorder %s19, 0
    %s22 = sadd.s32 %s21, 1
    %s23 = scalar_select %p20, %s21, %s22
    %p26 = pneg %p20
    %p27 = scmp.eq.s32.totalorder %s11, 1
    %p28 = por %p26, %p27
    %p29 = scmp.ne.s32.totalorder %s21, %s24
    %p30 = scmp.eq.s32.totalorder %s11, 0
    %p31 = por %p29, %p30
    %p32 = scmp.ne.s32.totalorder %s21, %s24
    %p33 = scmp.eq.s32.totalorder %s16, 1
    %p34 = por %p32, %p33
    %p35 = scmp.ne.s32.totalorder %s24, %s25
    %p36 = scmp.eq.s32.totalorder %s16, 0
    %p37 = por %p35, %p36
    %p38 = scmp.ne.s32.totalorder %s24, %s25
    %p39 = scmp.eq.s32.totalorder %s17, 1
    %p40 = por %p38, %p39
    %p42 = scmp.ne.s32.totalorder %s25, %s41
    %p43 = scmp.eq.s32.totalorder %s17, 0
    %p44 = por %p42, %p43
    %s46 = sadd.s32 %s45, 1
    %p49 = scmp.eq.s32.totalorder %s11, 1
    %p50 = scmp.ne.s32.totalorder %s45, %s47
    %p51 = scmp.eq.s32.totalorder %s11, 0
    %p52 = por %p50, %p51
    %p53 = scmp.ne.s32.totalorder %s45, %s47
    %p54 = scmp.eq.s32.totalorder %s16, 1
    %p55 = por %p53, %p54
    %p56 = scmp.ne.s32.totalorder %s47, %s48
    %p57 = scmp.eq.s32.totalorder %s16, 0
    %p58 = por %p56, %p57
    %p59 = scmp.ne.s32.totalorder %s47, %s48
    %p60 = scmp.eq.s32.totalorder %s17, 1
    %p61 = por %p59, %p60
    %p63 = scmp.ne.s32.totalorder %s48, %s62
    %p64 = scmp.eq.s32.totalorder %s17, 0
    %p65 = por %p63, %p64
    %s67 = sadd.s32 %s66, 1
    %p70 = scmp.eq.s32.totalorder %s11, 1
    %p71 = scmp.ne.s32.totalorder %s66, %s68
    %p72 = scmp.eq.s32.totalorder %s11, 0
    %p73 = por %p71, %p72
    %p74 = scmp.ne.s32.totalorder %s66, %s68
    %p75 = scmp.eq.s32.totalorder %s16, 1
    %p76 = por %p74, %p75
    %p77 = scmp.ne.s32.totalorder %s68, %s69
    %p78 = scmp.eq.s32.totalorder %s16, 0
    %p79 = por %p77, %p78
    %p80 = scmp.ne.s32.totalorder %s68, %s69
    %p81 = scmp.eq.s32.totalorder %s17, 1
    %p82 = por %p80, %p81
    %p84 = scmp.ne.s32.totalorder %s69, %s83
    %p85 = scmp.eq.s32.totalorder %s17, 0
    %p86 = por %p84, %p85
    %s88 = sadd.s32 %s87, 1
    %p91 = scmp.eq.s32.totalorder %s11, 1
    %p92 = scmp.ne.s32.totalorder %s87, %s89
    %p93 = scmp.eq.s32.totalorder %s11, 0
    %p94 = por %p92, %p93
    %p95 = scmp.ne.s32.totalorder %s87, %s89
    %p96 = scmp.eq.s32.totalorder %s16, 1
    %p97 = por %p95, %p96
    %p98 = scmp.ne.s32.totalorder %s89, %s90
    %p99 = scmp.eq.s32.totalorder %s16, 0
    %p100 = por %p98, %p99
    %p101 = scmp.ne.s32.totalorder %s89, %s90
    %p102 = scmp.eq.s32.totalorder %s17, 1
    %p103 = por %p101, %p102
    %p105 = scmp.ne.s32.totalorder %s90, %s104
    %p106 = scmp.eq.s32.totalorder %s17, 0
    %p107 = por %p105, %p106
    %s109 = sadd.s32 %s108, 1
    %p112 = scmp.eq.s32.totalorder %s11, 1
    %p113 = scmp.ne.s32.totalorder %s108, %s110
    %p114 = scmp.eq.s32.totalorder %s11, 0
    %p115 = por %p113, %p114
    %p116 = scmp.ne.s32.totalorder %s108, %s110
    %p117 = scmp.eq.s32.totalorder %s16, 1
    %p118 = por %p116, %p117
    %p119 = scmp.ne.s32.totalorder %s110, %s111
    %p120 = scmp.eq.s32.totalorder %s16, 0
    %p121 = por %p119, %p120
    %p122 = scmp.ne.s32.totalorder %s110, %s111
    %p123 = scmp.eq.s32.totalorder %s17, 1
    %p124 = por %p122, %p123
    %p126 = scmp.ne.s32.totalorder %s111, %s125
    %p127 = scmp.eq.s32.totalorder %s17, 0
    %p128 = por %p126, %p127
    %s129 = ssub.s32 %s11, %s18
    %p130 = scmp.eq.s32.totalorder %s129, 0
    %s132 = sadd.s32 %s131, 1
    %s133 = scalar_select %p130, %s131, %s132
    %p136 = pneg %p130
    %p137 = scmp.eq.s32.totalorder %s11, 1
    %p138 = por %p136, %p137
    %p139 = scmp.ne.s32.totalorder %s131, %s134
    %p140 = scmp.eq.s32.totalorder %s11, 0
    %p141 = por %p139, %p140
    %p142 = scmp.ne.s32.totalorder %s131, %s134
    %p143 = scmp.eq.s32.totalorder %s16, 1
    %p144 = por %p142, %p143
    %p145 = scmp.ne.s32.totalorder %s134, %s135
    %p146 = scmp.eq.s32.totalorder %s16, 0
    %p147 = por %p145, %p146
    %p148 = scmp.ne.s32.totalorder %s134, %s135
    %p149 = scmp.eq.s32.totalorder %s17, 1
    %p150 = por %p148, %p149
    %p152 = scmp.ne.s32.totalorder %s135, %s151
    %p153 = scmp.eq.s32.totalorder %s17, 0
    %p154 = por %p152, %p153
    %p155 = scmp.le.s32.totalorder 1, %s11
    %p156 = scmp.lt.s32.totalorder %s11, 3
    %p157 = pnand %p155, %p156
    %p158 = pneg %p157
    // Predicated region
    $region9: #{separate_head_forward.1} parent=5 // pred_check
      _
    $region10: #{separate_head_forward.1} parent=5 // pred_check_branch
      %160 = sbr.rel (%p157) target = $region12
    $region11: #{separate_head_forward.1} parent=5 // pred_region
      %s161 = ssub.s32 %s11, 1
      // Predicated region
      $region13: #{separate_head_forward.1} parent=11 // pred_check
        %p162 = pneg %p58
      $region14: #{separate_head_forward.1} parent=11 // pred_check_branch
        %164 = sbr.rel (%p162) target = $region16
      $region15: #{separate_head_forward.1} parent=11 // pred_region
        _
      $region16: #{separate_head_forward.1} parent=11 // pred_fallthru
        _
      // Predicated region
      $region17: #{separate_head_forward.1} parent=11 // pred_check
        %p165 = pneg %p79
      $region18: #{separate_head_forward.1} parent=11 // pred_check_branch
        %167 = sbr.rel (%p165) target = $region20
      $region19: #{separate_head_forward.1} parent=11 // pred_region
        _
      $region20: #{separate_head_forward.1} parent=11 // pred_fallthru
        _
      // Predicated region
      $region21: #{separate_head_forward.1} parent=11 // pred_check
        %p168 = pneg %p100
      $region22: #{separate_head_forward.1} parent=11 // pred_check_branch
        %170 = sbr.rel (%p168) target = $region24
      $region23: #{separate_head_forward.1} parent=11 // pred_region
        _
      $region24: #{separate_head_forward.1} parent=11 // pred_fallthru
        _
      // Predicated region
      $region25: #{separate_head_forward.1} parent=11 // pred_check
        %p171 = pneg %p121
      $region26: #{separate_head_forward.1} parent=11 // pred_check_branch
        %173 = sbr.rel (%p171) target = $region28
      $region27: #{separate_head_forward.1} parent=11 // pred_region
        _
      $region28: #{separate_head_forward.1} parent=11 // pred_fallthru
        _
    $region12: #{separate_head_forward.1} parent=5 // pred_fallthru
      _
    %p174 = scmp.lt.s32.totalorder %s11, 2
    // Predicated region
    $region29: #{separate_head_forward.1} parent=5 // pred_check
      %p175 = pneg %p174
    $region30: #{separate_head_forward.1} parent=5 // pred_check_branch
      %177 = sbr.rel (%p175) target = $region32
    $region31: #{separate_head_forward.1} parent=5 // pred_region
      // Predicated region
      $region33: #{separate_head_forward.1} parent=31 // pred_check
        %p178 = pneg %p31
      $region34: #{separate_head_forward.1} parent=31 // pred_check_branch
        %180 = sbr.rel (%p178) target = $region36
      $region35: #{separate_head_forward.1} parent=31 // pred_region
        %p181 = scmp.lt.s32.totalorder %s11, 1
        %s182 = scalar_select %p181, %s11, 1
        %s183 = smul.addr %s182, 2
        %s184 = smul.addr %s183, 8
        %s185 = scalar_lea.vmem %s0, %s184
      $region36: #{separate_head_forward.1} parent=31 // pred_fallthru
        _
    $region32: #{separate_head_forward.1} parent=5 // pred_fallthru
      _
    %p186 = scmp.le.s32.totalorder 1, %s11
    %p187 = scmp.lt.s32.totalorder %s11, 3
    %p188 = pnand %p186, %p187
    %p189 = pneg %p188
    // Predicated region
    $region37: #{separate_head_forward.1} parent=5 // pred_check
      _
    $region38: #{separate_head_forward.1} parent=5 // pred_check_branch
      %191 = sbr.rel (%p188) target = $region40
    $region39: #{separate_head_forward.1} parent=5 // pred_region
      %s192 = ssub.s32 %s11, 1
      %p193 = scmp.lt.s32.totalorder %s16, 1
      %s194 = scalar_select %p193, %s16, 1
      %s195 = smul.addr %s194, 2
      %s196 = smul.addr %s195, 8
      %s197 = scalar_lea.vmem %s0, %s196
      %p198 = pneg %p37
      %p199 = pneg %p34
      %p200 = pneg %p58
      %p201 = pneg %p55
      %p202 = pneg %p79
      %p203 = pneg %p76
      %p204 = pneg %p100
      %p205 = pneg %p97
      %p206 = pneg %p121
      %p207 = pneg %p118
      %p208 = pneg %p147
      %p209 = pneg %p144
      %p210 = scmp.lt.s32.totalorder %s16, 1
      %s211 = scalar_select %p210, %s16, 1
      %s212 = smul.addr %s211, 2
      %s213 = smul.addr %s212, 8
      %s214 = scalar_lea.vmem %s5, %s213
      %p215 = scmp.lt.s32.totalorder %s16, 1
      %s216 = scalar_select %p215, %s16, 1
      %s217 = smul.addr %s216, 2
      %s218 = smul.addr %s217, 8
      %s219 = scalar_lea.vmem %s0, %s218
      %p220 = scmp.lt.s32.totalorder %s16, 1
      %s221 = scalar_select %p220, %s16, 1
      %s222 = smul.addr %s221, 2
      %s223 = smul.addr %s222, 8
      %s224 = scalar_lea.vmem %s5, %s223
      %v225 = vld [vmem:[%s219] sm:$0xff]
      %v226 = vld [vmem:[%s219 + $0x8] sm:$0xff]
      %v227 = vld [vmem:[%s1] sm:$0xff]
      %v228 = vld [vmem:[%s1 + $0x8] sm:$0xff]
      %v229 = vld [vmem:[%s1 + $0x10] sm:$0xff]
      %v230 = vld [vmem:[%s2] sm:$0x1]
      %v232 = vlaneseq
      %v233 = vshrl.u32 %v232, 7
      %v234 = vsub.s32 0, %v233
      %v235 = vrot.slane %v230, %v234
      %vm237 = vcmask 195584
      %v239 = vsel %vm237, %v225, 0
      %v242 = vsel %vm237, %v226, 0
      %244 = vmatprep.subr.mxu0 0.0
      %245 = vmatpush1.msra.mxu0 %v227
      %246 = vmatprep.subr.mxu0 0.0
      %247 = vmatpush1.msra.mxu0 %v228
      %248 = vmatprep.subr.mxu0 0.0
      %249 = vmatpush1.msra.mxu0 %v229
      %250 = vmatprep.subr.mxu0 0.0
      %251 = vmatpush1.msra.mxu0 0.0
      %252 = vmatprep.subr.mxu0 0.0
      %253 = vmatpush1.msra.mxu0 0.0
      %254 = vmatprep.subr.mxu0 0.0
      %255 = vmatpush1.msra.mxu0 0.0
      %256 = vmatprep.subr.mxu0 0.0
      %257 = vmatpush1.msra.mxu0 0.0
      %258 = vmatprep.subr.mxu0 0.0
      %259 = vmatpush1.msra.mxu0 0.0
      %260 = vmatprep.subr.mxu0 0.0
      %261 = vmatpush1.msra.mxu0 0.0
      %262 = vmatprep.subr.mxu0 0.0
      %263 = vmatpush1.msra.mxu0 0.0
      %264 = vmatprep.subr.mxu0 0.0
      %265 = vmatpush1.msra.mxu0 0.0
      %266 = vmatprep.subr.mxu0 0.0
      %267 = vmatpush1.msra.mxu0 0.0
      %268 = vmatprep.subr.mxu0 0.0
      %269 = vmatpush1.msra.mxu0 0.0
      %270 = vmatprep.subr.mxu0 0.0
      %271 = vmatpush1.msra.mxu0 0.0
      %272 = vmatprep.subr.mxu0 0.0
      %273 = vmatpush1.msra.mxu0 0.0
      %274 = vmatprep.subr.mxu0 0.0
      %275 = vmatpush1.msra.mxu0 0.0
      %276 = vmatprep.subr.mxu0 0.0
      %277 = vmatpush1.msra.mxu0 0.0
      %278 = vmatprep.subr.mxu0 0.0
      %279 = vmatpush1.msra.mxu0 0.0
      %280 = vmatprep.subr.mxu0 0.0
      %281 = vmatpush1.msra.mxu0 0.0
      %282 = vmatprep.subr.mxu0 0.0
      %283 = vmatpush1.msra.mxu0 0.0
      %284 = vmatprep.subr.mxu0 0.0
      %285 = vmatpush1.msra.mxu0 0.0
      %286 = vmatprep.subr.mxu0 0.0
      %287 = vmatpush1.msra.mxu0 0.0
      %288 = vmatprep.subr.mxu0 0.0
      %289 = vmatpush1.msra.mxu0 0.0
      %290 = vmatprep.subr.mxu0 0.0
      %291 = vmatpush1.msra.mxu0 0.0
      %292 = vmatprep.subr.mxu0 0.0
      %293 = vmatpush1.msra.mxu0 0.0
      %294 = vmatprep.subr.mxu0 0.0
      %295 = vmatpush1.msra.mxu0 0.0
      %296 = vmatprep.subr.mxu0 0.0
      %297 = vmatpush1.msra.mxu0 0.0
      %298 = vmatprep.subr.mxu0 0.0
      %299 = vmatpush1.msra.mxu0 0.0
      %300 = vmatprep.subr.mxu0 0.0
      %301 = vmatpush1.msra.mxu0 0.0
      %302 = vmatprep.subr.mxu0 0.0
      %303 = vmatpush1.msra.mxu0 0.0
      %304 = vmatprep.subr.mxu0 0.0
      %305 = vmatpush1.msra.mxu0 0.0
      %306 = vmatprep.subr.mxu0 0.0
      %307 = vmatpush1.msra.mxu0 0.0
      %308 = vmatprep.mubr.f32.mxu0 0.0
      %309 = vmatmul.mubr.f32.gmra.mrb[0].mxu0 %v239
      %v310 = vpop.f32.mrb[0].mxu0
      %v311 = vadd.f32 %v235, %v310
      %v312 = vpop.f32.mrb[0].mxu0
      %313 = vmatprep.mubr.f32.mxu0 0.0
      %314 = vmatmul.mubr.f32.gmra.mrb[0].mxu0 %v242
      %v315 = vpop.f32.mrb[0].mxu0
      %v316 = vadd.f32 %v235, %v315
      %v317 = vpop.f32.mrb[0].mxu0
      %318 = vdwg.mxu0
      %v319 = vmax.f32 %v311, 0.0
      %v320 = vmax.f32 %v316, 0.0
      %vm321 = vcmask 785408
      %322 = vst.msk [vmem:[#allocation2] sm:$0xff] %vm321, 0.0
      %323 = vst.msk [vmem:[#allocation2 + $0x8] sm:$0xff] %vm321, 0.0
      %vm324 = vcmask 779264
      %325 = vst.msk [vmem:[#allocation2 + $0x10] sm:$0x3] %vm324, 0.0
      %326 = vst.msk [vmem:[#allocation2 + $0x1] sm:$0xff] %vm321, %v319
      %327 = vst.msk [vmem:[#allocation2 + $0x9] sm:$0xff] %vm321, %v320
      %v328 = vld [vmem:[#allocation2] sm:$0xff]
      %v329 = vld [vmem:[#allocation2 + $0x8] sm:$0xff]
      %v330 = vld [vmem:[%s3] sm:$0xff]
      %v331 = vld [vmem:[%s3 + $0x8] sm:$0xff]
      %v332 = vld [vmem:[%s3 + $0x10] sm:$0xff]
      %v333 = vld [vmem:[%s3 + $0x18] sm:$0xff]
      %v334 = vld [vmem:[%s3 + $0x20] sm:$0xff]
      %v335 = vld [vmem:[%s3 + $0x28] sm:$0xff]
      %v336 = vld [vmem:[%s3 + $0x30] sm:$0xff]
      %v337 = vld [vmem:[%s3 + $0x38] sm:$0xff]
      %v338 = vld [vmem:[%s3 + $0x40] sm:$0xff]
      %v339 = vld [vmem:[%s3 + $0x48] sm:$0xff]
      %v340 = vld [vmem:[%s3 + $0x50] sm:$0xff]
      %v341 = vld [vmem:[%s3 + $0x58] sm:$0xff]
      %v342 = vld [vmem:[#allocation2 + $0x1] sm:$0xff]
      %v343 = vld [vmem:[#allocation2 + $0x9] sm:$0xff]
      %s344 = scalar_lea.vmem %s3, 96
      %v345 = vld [vmem:[%s344] sm:$0xff]
      %v346 = vld [vmem:[%s344 + $0x8] sm:$0xff]
      %v347 = vld [vmem:[%s344 + $0x10] sm:$0xff]
      %v348 = vld [vmem:[%s344 + $0x18] sm:$0xff]
      %v349 = vld [vmem:[%s344 + $0x20] sm:$0xff]
      %v350 = vld [vmem:[%s344 + $0x28] sm:$0xff]
      %v351 = vld [vmem:[%s344 + $0x30] sm:$0xff]
      %v352 = vld [vmem:[%s344 + $0x38] sm:$0xff]
      %v353 = vld [vmem:[%s344 + $0x40] sm:$0xff]
      %v354 = vld [vmem:[%s344 + $0x48] sm:$0xff]
      %v355 = vld [vmem:[%s344 + $0x50] sm:$0xff]
      %v356 = vld [vmem:[%s344 + $0x58] sm:$0xff]
      %v358 = vsel %vm321, %v342, 0
      %v361 = vsel %vm321, %v343, 0
      %363 = vmatprep.subr.mxu0 0.0
      %364 = vmatpush1.msra.mxu0 %v345
      %365 = vmatprep.subr.mxu0 0.0
      %366 = vmatpush1.msra.mxu0 %v346
      %367 = vmatprep.subr.mxu0 0.0
      %368 = vmatpush1.msra.mxu0 %v347
      %369 = vmatprep.subr.mxu0 0.0
      %370 = vmatpush1.msra.mxu0 %v348
      %371 = vmatprep.subr.mxu0 0.0
      %372 = vmatpush1.msra.mxu0 %v349
      %373 = vmatprep.subr.mxu0 0.0
      %374 = vmatpush1.msra.mxu0 %v350
      %375 = vmatprep.subr.mxu0 0.0
      %376 = vmatpush1.msra.mxu0 %v351
      %377 = vmatprep.subr.mxu0 0.0
      %378 = vmatpush1.msra.mxu0 %v352
      %379 = vmatprep.subr.mxu0 0.0
      %380 = vmatpush1.msra.mxu0 %v353
      %381 = vmatprep.subr.mxu0 0.0
      %382 = vmatpush1.msra.mxu0 %v354
      %383 = vmatprep.subr.mxu0 0.0
      %384 = vmatpush1.msra.mxu0 %v355
      %385 = vmatprep.subr.mxu0 0.0
      %386 = vmatpush1.msra.mxu0 %v356
      %387 = vmatprep.subr.mxu0 0.0
      %388 = vmatpush1.msra.mxu0 0.0
      %389 = vmatprep.subr.mxu0 0.0
      %390 = vmatpush1.msra.mxu0 0.0
      %391 = vmatprep.subr.mxu0 0.0
      %392 = vmatpush1.msra.mxu0 0.0
      %393 = vmatprep.subr.mxu0 0.0
      %394 = vmatpush1.msra.mxu0 0.0
      %395 = vmatprep.subr.mxu0 0.0
      %396 = vmatpush1.msra.mxu0 0.0
      %397 = vmatprep.subr.mxu0 0.0
      %398 = vmatpush1.msra.mxu0 0.0
      %399 = vmatprep.subr.mxu0 0.0
      %400 = vmatpush1.msra.mxu0 0.0
      %401 = vmatprep.subr.mxu0 0.0
      %402 = vmatpush1.msra.mxu0 0.0
      %403 = vmatprep.subr.mxu0 0.0
      %404 = vmatpush1.msra.mxu0 0.0
      %405 = vmatprep.subr.mxu0 0.0
      %406 = vmatpush1.msra.mxu0 0.0
      %407 = vmatprep.subr.mxu0 0.0
      %408 = vmatpush1.msra.mxu0 0.0
      %409 = vmatprep.subr.mxu0 0.0
      %410 = vmatpush1.msra.mxu0 0.0
      %411 = vmatprep.subr.mxu0 0.0
      %412 = vmatpush1.msra.mxu0 0.0
      %413 = vmatprep.subr.mxu0 0.0
      %414 = vmatpush1.msra.mxu0 0.0
      %415 = vmatprep.subr.mxu0 0.0
      %416 = vmatpush1.msra.mxu0 0.0
      %417 = vmatprep.subr.mxu0 0.0
      %418 = vmatpush1.msra.mxu0 0.0
      %419 = vmatprep.subr.mxu0 0.0
      %420 = vmatpush1.msra.mxu0 0.0
      %421 = vmatprep.subr.mxu0 0.0
      %422 = vmatpush1.msra.mxu0 0.0
      %423 = vmatprep.subr.mxu0 0.0
      %424 = vmatpush1.msra.mxu0 0.0
      %425 = vmatprep.subr.mxu0 0.0
      %426 = vmatpush1.msra.mxu0 0.0
      %427 = vmatprep.mubr.f32.mxu0 0.0
      %428 = vmatmul.mubr.f32.gmra.mrb[0].mxu0 %v358
      %v429 = vpop.f32.mrb[0].mxu0
      %v430 = vadd.f32 0.0, %v429
      %v431 = vpop.f32.mrb[0].mxu0
      %432 = vmatprep.mubr.f32.mxu0 0.0
      %433 = vmatmul.mubr.f32.gmra.mrb[0].mxu0 %v361
      %v434 = vpop.f32.mrb[0].mxu0
      %v435 = vadd.f32 0.0, %v434
      %v436 = vpop.f32.mrb[0].mxu0
      %437 = vdwg.mxu0
      %v439 = vsel %vm321, %v328, 0
      %v442 = vsel %vm321, %v329, 0
      %444 = vmatprep.subr.mxu0 0.0
      %445 = vmatpush1.msra.mxu0 %v330
      %446 = vmatprep.subr.mxu0 0.0
      %447 = vmatpush1.msra.mxu0 %v331
      %448 = vmatprep.subr.mxu0 0.0
      %449 = vmatpush1.msra.mxu0 %v332
      %450 = vmatprep.subr.mxu0 0.0
      %451 = vmatpush1.msra.mxu0 %v333
      %452 = vmatprep.subr.mxu0 0.0
      %453 = vmatpush1.msra.mxu0 %v334
      %454 = vmatprep.subr.mxu0 0.0
      %455 = vmatpush1.msra.mxu0 %v335
      %456 = vmatprep.subr.mxu0 0.0
      %457 = vmatpush1.msra.mxu0 %v336
      %458 = vmatprep.subr.mxu0 0.0
      %459 = vmatpush1.msra.mxu0 %v337
      %460 = vmatprep.subr.mxu0 0.0
      %461 = vmatpush1.msra.mxu0 %v338
      %462 = vmatprep.subr.mxu0 0.0
      %463 = vmatpush1.msra.mxu0 %v339
      %464 = vmatprep.subr.mxu0 0.0
      %465 = vmatpush1.msra.mxu0 %v340
      %466 = vmatprep.subr.mxu0 0.0
      %467 = vmatpush1.msra.mxu0 %v341
      %468 = vmatprep.subr.mxu0 0.0
      %469 = vmatpush1.msra.mxu0 0.0
      %470 = vmatprep.subr.mxu0 0.0
      %471 = vmatpush1.msra.mxu0 0.0
      %472 = vmatprep.subr.mxu0 0.0
      %473 = vmatpush1.msra.mxu0 0.0
      %474 = vmatprep.subr.mxu0 0.0
      %475 = vmatpush1.msra.mxu0 0.0
      %476 = vmatprep.subr.mxu0 0.0
      %477 = vmatpush1.msra.mxu0 0.0
      %478 = vmatprep.subr.mxu0 0.0
      %479 = vmatpush1.msra.mxu0 0.0
      %480 = vmatprep.subr.mxu0 0.0
      %481 = vmatpush1.msra.mxu0 0.0
      %482 = vmatprep.subr.mxu0 0.0
      %483 = vmatpush1.msra.mxu0 0.0
      %484 = vmatprep.subr.mxu0 0.0
      %485 = vmatpush1.msra.mxu0 0.0
      %486 = vmatprep.subr.mxu0 0.0
      %487 = vmatpush1.msra.mxu0 0.0
      %488 = vmatprep.subr.mxu0 0.0
      %489 = vmatpush1.msra.mxu0 0.0
      %490 = vmatprep.subr.mxu0 0.0
      %491 = vmatpush1.msra.mxu0 0.0
      %492 = vmatprep.subr.mxu0 0.0
      %493 = vmatpush1.msra.mxu0 0.0
      %494 = vmatprep.subr.mxu0 0.0
      %495 = vmatpush1.msra.mxu0 0.0
      %496 = vmatprep.subr.mxu0 0.0
      %497 = vmatpush1.msra.mxu0 0.0
      %498 = vmatprep.subr.mxu0 0.0
      %499 = vmatpush1.msra.mxu0 0.0
      %500 = vmatprep.subr.mxu0 0.0
      %501 = vmatpush1.msra.mxu0 0.0
      %502 = vmatprep.subr.mxu0 0.0
      %503 = vmatpush1.msra.mxu0 0.0
      %504 = vmatprep.subr.mxu0 0.0
      %505 = vmatpush1.msra.mxu0 0.0
      %506 = vmatprep.subr.mxu0 0.0
      %507 = vmatpush1.msra.mxu0 0.0
      %508 = vmatprep.mubr.f32.mxu0 0.0
      %509 = vmatmul.mubr.f32.gmra.mrb[0].mxu0 %v439
      %v510 = vpop.f32.mrb[0].mxu0
      %v511 = vadd.f32 %v430, %v510
      %v512 = vpop.f32.mrb[0].mxu0
      %513 = vmatprep.mubr.f32.mxu0 0.0
      %514 = vmatmul.mubr.f32.gmra.mrb[0].mxu0 %v442
      %v515 = vpop.f32.mrb[0].mxu0
      %v516 = vadd.f32 %v435, %v515
      %v517 = vpop.f32.mrb[0].mxu0
      %518 = vdwg.mxu0
      %v519 = vld [vmem:[#allocation2 + $0x2] sm:$0xff]
      %v520 = vld [vmem:[#allocation2 + $0xa] sm:$0xff]
      %s521 = scalar_lea.vmem %s3, 192
      %v522 = vld [vmem:[%s521] sm:$0xff]
      %v523 = vld [vmem:[%s521 + $0x8] sm:$0xff]
      %v524 = vld [vmem:[%s521 + $0x10] sm:$0xff]
      %v525 = vld [vmem:[%s521 + $0x18] sm:$0xff]
      %v526 = vld [vmem:[%s521 + $0x20] sm:$0xff]
      %v527 = vld [vmem:[%s521 + $0x28] sm:$0xff]
      %v528 = vld [vmem:[%s521 + $0x30] sm:$0xff]
      %v529 = vld [vmem:[%s521 + $0x38] sm:$0xff]
      %v530 = vld [vmem:[%s521 + $0x40] sm:$0xff]
      %v531 = vld [vmem:[%s521 + $0x48] sm:$0xff]
      %v532 = vld [vmem:[%s521 + $0x50] sm:$0xff]
      %v533 = vld [vmem:[%s521 + $0x58] sm:$0xff]
      %v535 = vsel %vm321, %v519, 0
      %v538 = vsel %vm321, %v520, 0
      %540 = vmatprep.subr.mxu0 0.0
      %541 = vmatpush1.msra.mxu0 %v522
      %542 = vmatprep.subr.mxu0 0.0
      %543 = vmatpush1.msra.mxu0 %v523
      %544 = vmatprep.subr.mxu0 0.0
      %545 = vmatpush1.msra.mxu0 %v524
      %546 = vmatprep.subr.mxu0 0.0
      %547 = vmatpush1.msra.mxu0 %v525
      %548 = vmatprep.subr.mxu0 0.0
      %549 = vmatpush1.msra.mxu0 %v526
      %550 = vmatprep.subr.mxu0 0.0
      %551 = vmatpush1.msra.mxu0 %v527
      %552 = vmatprep.subr.mxu0 0.0
      %553 = vmatpush1.msra.mxu0 %v528
      %554 = vmatprep.subr.mxu0 0.0
      %555 = vmatpush1.msra.mxu0 %v529
      %556 = vmatprep.subr.mxu0 0.0
      %557 = vmatpush1.msra.mxu0 %v530
      %558 = vmatprep.subr.mxu0 0.0
      %559 = vmatpush1.msra.mxu0 %v531
      %560 = vmatprep.subr.mxu0 0.0
      %561 = vmatpush1.msra.mxu0 %v532
      %562 = vmatprep.subr.mxu0 0.0
      %563 = vmatpush1.msra.mxu0 %v533
      %564 = vmatprep.subr.mxu0 0.0
      %565 = vmatpush1.msra.mxu0 0.0
      %566 = vmatprep.subr.mxu0 0.0
      %567 = vmatpush1.msra.mxu0 0.0
      %568 = vmatprep.subr.mxu0 0.0
      %569 = vmatpush1.msra.mxu0 0.0
      %570 = vmatprep.subr.mxu0 0.0
      %571 = vmatpush1.msra.mxu0 0.0
      %572 = vmatprep.subr.mxu0 0.0
      %573 = vmatpush1.msra.mxu0 0.0
      %574 = vmatprep.subr.mxu0 0.0
      %575 = vmatpush1.msra.mxu0 0.0
      %576 = vmatprep.subr.mxu0 0.0
      %577 = vmatpush1.msra.mxu0 0.0
      %578 = vmatprep.subr.mxu0 0.0
      %579 = vmatpush1.msra.mxu0 0.0
      %580 = vmatprep.subr.mxu0 0.0
      %581 = vmatpush1.msra.mxu0 0.0
      %582 = vmatprep.subr.mxu0 0.0
      %583 = vmatpush1.msra.mxu0 0.0
      %584 = vmatprep.subr.mxu0 0.0
      %585 = vmatpush1.msra.mxu0 0.0
      %586 = vmatprep.subr.mxu0 0.0
      %587 = vmatpush1.msra.mxu0 0.0
      %588 = vmatprep.subr.mxu0 0.0
      %589 = vmatpush1.msra.mxu0 0.0
      %590 = vmatprep.subr.mxu0 0.0
      %591 = vmatpush1.msra.mxu0 0.0
      %592 = vmatprep.subr.mxu0 0.0
      %593 = vmatpush1.msra.mxu0 0.0
      %594 = vmatprep.subr.mxu0 0.0
      %595 = vmatpush1.msra.mxu0 0.0
      %596 = vmatprep.subr.mxu0 0.0
      %597 = vmatpush1.msra.mxu0 0.0
      %598 = vmatprep.subr.mxu0 0.0
      %599 = vmatpush1.msra.mxu0 0.0
      %600 = vmatprep.subr.mxu0 0.0
      %601 = vmatpush1.msra.mxu0 0.0
      %602 = vmatprep.subr.mxu0 0.0
      %603 = vmatpush1.msra.mxu0 0.0
      %604 = vmatprep.mubr.f32.mxu0 0.0
      %605 = vmatmul.mubr.f32.gmra.mrb[0].mxu0 %v535
      %v606 = vpop.f32.mrb[0].mxu0
      %v607 = vadd.f32 0.0, %v606
      %v608 = vpop.f32.mrb[0].mxu0
      %609 = vmatprep.mubr.f32.mxu0 0.0
      %610 = vmatmul.mubr.f32.gmra.mrb[0].mxu0 %v538
      %v611 = vpop.f32.mrb[0].mxu0
      %v612 = vadd.f32 0.0, %v611
      %v613 = vpop.f32.mrb[0].mxu0
      %614 = vdwg.mxu0
      %v615 = vadd.f32 %v511, %v607
      %v616 = vadd.f32 %v516, %v612
      %v617 = vld [vmem:[%s4] sm:$0x1]
      %v619 = vlaneseq
      %v620 = vshrl.u32 %v619, 7
      %v621 = vsub.s32 0, %v620
      %v622 = vrot.slane %v617, %v621
      %v624 = vadd.f32 %v615, %v622
      %v625 = vadd.f32 %v616, %v622
      %626 = vst [vmem:[%s224] sm:$0xff] %v624
      %627 = vst [vmem:[%s224 + $0x8] sm:$0xff] %v625
      %p628 = scmp.lt.s32.totalorder %s16, 1
      %s629 = scalar_select %p628, %s16, 1
      %s630 = smul.addr %s629, 2
      %s631 = smul.addr %s630, 8
      %s632 = scalar_lea.vmem %s5, %s631
      // Predicated region
      $region41: #{separate_head_forward.1} parent=39 // pred_check
        %p633 = pneg %p144
      $region42: #{separate_head_forward.1} parent=39 // pred_check_branch
        %635 = sbr.rel (%p633) target = $region44
      $region43: #{separate_head_forward.1} parent=39 // pred_region
        _
      $region44: #{separate_head_forward.1} parent=39 // pred_fallthru
        _
    $region40: #{separate_head_forward.1} parent=5 // pred_fallthru
      _
    %p636 = scmp.le.s32.totalorder 2, %s11
    // Predicated region
    $region45: #{separate_head_forward.1} parent=5 // pred_check
      %p637 = pneg %p636
    $region46: #{separate_head_forward.1} parent=5 // pred_check_branch
      %639 = sbr.rel (%p637) target = $region48
    $region47: #{separate_head_forward.1} parent=5 // pred_region
      %s640 = ssub.s32 %s11, 2
      // Predicated region
      $region49: #{separate_head_forward.1} parent=47 // pred_check
        %p641 = pneg %p150
      $region50: #{separate_head_forward.1} parent=47 // pred_check_branch
        %643 = sbr.rel (%p641) target = $region52
      $region51: #{separate_head_forward.1} parent=47 // pred_region
        %p644 = scmp.lt.s32.totalorder %s17, 1
        %s645 = scalar_select %p644, %s17, 1
        %s646 = smul.addr %s645, 2
        %s647 = smul.addr %s646, 8
        %s648 = scalar_lea.vmem %s5, %s647
      $region52: #{separate_head_forward.1} parent=47 // pred_fallthru
        _
    $region48: #{separate_head_forward.1} parent=5 // pred_fallthru
      _
  $region6: #{separate_head_forward.1} parent=0 // loop_footer
    %s15 = sadd.s32 1, %s11
  $region7: #{separate_head_forward.1} parent=0 // loop_footer_branch
    %10 = sbr.rel target = $region3
  $region8: #{separate_head_forward.1} parent=0 // loop_exit
    _

</llo_original>
